<compile_context>
chip_gen: v5e
topology: v5e:2x2
jax: 0.10.0
libtpu: 0.0.40
codegen_flags: <defaults>
</compile_context>

<pallas_src>
import functools

import jax
import jax.numpy as jnp
import numpy as np
from jax.experimental import pallas as pl
from jax.experimental.pallas import tpu as pltpu


def _wave_block_kernel(x_ref, w0_ref, b0_ref, wfg_ref, bfg_ref, w1_ref, b1_ref,
                       out_ref, *, num_rates, kernel_size, batch_block, seq_len):
    """One batch block per grid step.  Refs:
       x_ref   : (Bb, C_in, T)          f32
       w0_ref  : (C_out, C_in)          bf16    b0_ref  : (C_out, 1)      f32
       wfg_ref : (R, 2*C_out, K*C_out)  bf16    bfg_ref : (R, 2*C_out, 1) f32
       w1_ref  : (R, C_out, C_out)      bf16    b1_ref  : (R, C_out, 1)   f32
       out_ref : (Bb, C_out, T)
    """
    f32 = jnp.float32
    bf16 = jnp.bfloat16
    C_out = w0_ref.shape[0]
    T = seq_len
    Bb = batch_block
    K = kernel_size
    W = Bb * T  # matmul RHS lane width (batch block concatenated along lanes)

    # Lane position within each length-T segment -> static per-tap boundary masks.
    lane_idx = jax.lax.broadcasted_iota(jnp.int32, (C_out, W), 1)
    lane_pos = (lane_idx % T) if Bb > 1 else lane_idx

    # Concatenate the batch block along lanes (T-aligned segments -> cheap concat).
    xin_parts = [x_ref[b].astype(bf16) for b in range(Bb)]
    xin = xin_parts[0] if Bb == 1 else jnp.concatenate(xin_parts, axis=-1)

    # 1x1 input projection (convs[0]) — bf16 operands, f32 accumulation.
    x = jnp.dot(w0_ref[...], xin, preferred_element_type=f32) + b0_ref[...]
    res = x                                                      # (C_out, W) f32

    for i in range(num_rates):                 # static unrolled loop over rates
        d = 2 ** i
        p = d * (K - 1) // 2                   # PyTorch "same" padding (odd K)

        x_bf = x.astype(bf16)
        taps = []
        for j in range(K):
            s = p - j * d          # tap_j[:, t] = x[:, t - s]  (zero out of range)
            if s == 0:
                taps.append(x_bf)
                continue
            # In-register dilated tap: XLU rotate + VPU boundary mask.  No VMEM
            # store->load round trip (previous xpad scratch removed).  Roll in
            # f32 (safe lane packing), cast to bf16 before the sublane concat.
            rolled = pltpu.roll(x, shift=s % W, axis=1)
            mask = (lane_pos >= s) if s > 0 else (lane_pos < T + s)
            taps.append(jnp.where(mask, rolled, 0.0).astype(bf16))
        xs = taps[0] if K == 1 else jnp.concatenate(taps, axis=0)  # (K*C, W) bf16

        # Fused filter+gate dilated conv: ONE (2C, K*C) @ (K*C, W) matmul.
        fg = jnp.dot(wfg_ref[i], xs, preferred_element_type=f32) + bfg_ref[i]
        z = jnp.tanh(fg[:C_out]) * jax.nn.sigmoid(fg[C_out:])     # f32 epilogue

        # 1x1 projection convs[i+1] and residual add.
        x = jnp.dot(w1_ref[i], z.astype(bf16),
                    preferred_element_type=f32) + b1_ref[i]
        res = res + x

    # Write back per batch element (T-aligned lane slices -> unmasked stores).
    for b in range(Bb):
        out_ref[b] = res[:, b * T:(b + 1) * T].astype(out_ref.dtype)


def _pick_batch_block(B, T, target_lanes=1024):
    """Largest batch block that keeps the matmul RHS <= ~1024 lanes while
    preferring >=2 grid steps (v7x megacore sharding + software pipelining)."""
    divisors = [d for d in range(1, B + 1) if B % d == 0]
    cands = [d for d in divisors if d * T <= target_lanes and B // d >= 2]
    if cands:
        return max(cands)
    cands = [d for d in divisors if d * T <= target_lanes]
    return max(cands) if cands else 1


def wave_block(x, params, *, num_rates, kernel_size, batch_block=None):
    """x: (B, C_in, T) float32.  params hold PyTorch-shaped Conv1d weights."""
    assert kernel_size % 2 == 1, (
        "Wave_Block 'same-length' kernel assumes odd kernel_size (PyTorch's "
        "padding=int(d*(K-1)/2) changes the sequence length for even K).")
    B, C_in, T = x.shape
    C_out = params["w0"].shape[0]
    R, K = num_rates, kernel_size
    bf16 = jnp.bfloat16

    bb = batch_block if batch_block is not None else _pick_batch_block(B, T)
    assert B % bb == 0

    # ---- pre-pack weights lane-densely (plain JAX glue, done once) ----------
    w0 = params["w0"][:, :, 0].astype(bf16)                     # (C_out, C_in)
    b0 = params["b0"][:, None]                                  # (C_out, 1)
    # (R, O, I, K) -> (R, O, K, I) -> (R, O, K*I); contraction order matches
    # the sublane stacking [tap0; tap1; ...] of the activation in the kernel.
    wf_r = jnp.transpose(params["wf"], (0, 1, 3, 2)).reshape(R, C_out, K * C_out)
    wg_r = jnp.transpose(params["wg"], (0, 1, 3, 2)).reshape(R, C_out, K * C_out)
    w_fg = jnp.concatenate([wf_r, wg_r], axis=1).astype(bf16)   # (R, 2C, K*C)
    b_fg = jnp.concatenate([params["bf"], params["bg"]], axis=1)[:, :, None]
    w1 = params["w1"][:, :, :, 0].astype(bf16)                  # (R, C, C)
    b1 = params["b1"][:, :, None]                               # (R, C, 1)

    kernel = functools.partial(_wave_block_kernel, num_rates=R,
                               kernel_size=K, batch_block=bb, seq_len=T)

    def full(*shape):
        return pl.BlockSpec(shape, lambda g, _s=shape: (0,) * len(_s))

    # ---- cost estimate so XLA can schedule/overlap this small call ----------
    flops_per_item = 2 * C_out * C_in * T
    for _ in range(R):
        flops_per_item += 2 * (2 * C_out) * (K * C_out) * T + 2 * C_out * C_out * T
    weight_bytes = sum(int(np.prod(a.shape)) * a.dtype.itemsize
                       for a in (w0, b0, w_fg, b_fg, w1, b1))
    cost = pl.CostEstimate(
        flops=int(B * flops_per_item),
        transcendentals=int(B * R * 2 * C_out * T),
        bytes_accessed=int(B * (C_in + C_out) * T * 4 + weight_bytes))

    return pl.pallas_call(
        kernel,
        out_shape=jax.ShapeDtypeStruct((B, C_out, T), x.dtype),
        grid=(B // bb,),
        in_specs=[
            pl.BlockSpec((bb, C_in, T), lambda g: (g, 0, 0)),     # x (batch block)
            full(C_out, C_in),                                    # w0
            full(C_out, 1),                                       # b0
            full(R, 2 * C_out, K * C_out),                        # w_fg (fused)
            full(R, 2 * C_out, 1),                                # b_fg
            full(R, C_out, C_out),                                # w1
            full(R, C_out, 1),                                    # b1
        ],
        out_specs=pl.BlockSpec((bb, C_out, T), lambda g: (g, 0, 0)),
        compiler_params=pltpu.CompilerParams(
            dimension_semantics=("parallel",)),   # batch blocks independent -> megacore
        cost_estimate=cost,
    )(x, w0, b0, w_fg, b_fg, w1, b1)


# ---------------- pure-JAX reference (for correctness check) -----------------

def _conv1d_ref(x, w, b, dilation=1, padding=0):
    out = jax.lax.conv_general_dilated(
        x, w, window_strides=(1,), padding=[(padding, padding)],
        rhs_dilation=(dilation,), dimension_numbers=("NCH", "OIH", "NCH"),
        precision=jax.lax.Precision.HIGHEST)
    return out + b[None, :, None]


def wave_block_ref(x, params, *, num_rates, kernel_size):
    x = _conv1d_ref(x, params["w0"], params["b0"])
    res = x
    for i in range(num_rates):
        d = 2 ** i
        p = d * (kernel_size - 1) // 2
        f = _conv1d_ref(x, params["wf"][i], params["bf"][i], dilation=d, padding=p)
        g = _conv1d_ref(x, params["wg"][i], params["bg"][i], dilation=d, padding=p)
        x = jnp.tanh(f) * jax.nn.sigmoid(g)
        x = _conv1d_ref(x, params["w1"][i], params["b1"][i])
        res = res + x
    return res


if __name__ == "__main__":
    # Wave_Block(in_channels=4, out_channels=16, dilation_rates=3, kernel_size=3)
    B, C_in, C_out, T = 2, 4, 16, 128
    R, K = 3, 3

    key = jax.random.PRNGKey(0)
    ks = jax.random.split(key, 9)
    s = 0.3  # deterministic synthetic init (not a checkpoint load)
    params = {
        "w0": s * jax.random.normal(ks[0], (C_out, C_in, 1), jnp.float32),
        "b0": s * jax.random.normal(ks[1], (C_out,), jnp.float32),
        "wf": s * jax.random.normal(ks[2], (R, C_out, C_out, K), jnp.float32),
        "bf": s * jax.random.normal(ks[3], (R, C_out), jnp.float32),
        "wg": s * jax.random.normal(ks[4], (R, C_out, C_out, K), jnp.float32),
        "bg": s * jax.random.normal(ks[5], (R, C_out), jnp.float32),
        "w1": s * jax.random.normal(ks[6], (R, C_out, C_out, 1), jnp.float32),
        "b1": s * jax.random.normal(ks[7], (R, C_out), jnp.float32),
    }
    x = jax.random.normal(ks[8], (B, C_in, T), jnp.float32)

    out = jax.block_until_ready(wave_block(x, params, num_rates=R, kernel_size=K))
    ref = wave_block_ref(x, params, num_rates=R, kernel_size=K)

    assert out.shape == (B, C_out, T)
    # bf16 MXU operands vs. f32-HIGHEST reference -> slightly looser tolerance.
    np.testing.assert_allclose(np.asarray(out), np.asarray(ref),
                               rtol=2e-2, atol=2e-2)
    print("KERNEL_OK")
</pallas_src>

<mosaic_0001>
module attributes {stable_mosaic.version = 11 : i64} {
  func.func @_wave_block_kernel(%arg0: i32, %arg1: memref<1x4x128xf32, #tpu.memory_space<vmem>>, %arg2: memref<16x4xbf16, #tpu.memory_space<vmem>>, %arg3: memref<16x1xf32, #tpu.memory_space<vmem>>, %arg4: memref<3x32x48xbf16, #tpu.memory_space<vmem>>, %arg5: memref<3x32x1xf32, #tpu.memory_space<vmem>>, %arg6: memref<3x16x16xbf16, #tpu.memory_space<vmem>>, %arg7: memref<3x16x1xf32, #tpu.memory_space<vmem>>, %arg8: memref<1x16x128xf32, #tpu.memory_space<vmem>>) attributes {dimension_semantics = [#tpu.dimension_semantics<parallel>], iteration_bounds = array<i64: 2>, scalar_prefetch = 0 : i64, scratch_operands = 0 : i64, tpu.core_type = #tpu.core_type<tc>, window_params = [{transform_indices = @transform_0, window_bounds = array<i64: 1, 4, 128>}, {pipeline_mode = #tpu.pipeline_mode<synchronous>, transform_indices = @transform_1, window_bounds = array<i64: 16, 4>}, {pipeline_mode = #tpu.pipeline_mode<synchronous>, transform_indices = @transform_2, window_bounds = array<i64: 16, 1>}, {pipeline_mode = #tpu.pipeline_mode<synchronous>, transform_indices = @transform_3, window_bounds = array<i64: 3, 32, 48>}, {pipeline_mode = #tpu.pipeline_mode<synchronous>, transform_indices = @transform_4, window_bounds = array<i64: 3, 32, 1>}, {pipeline_mode = #tpu.pipeline_mode<synchronous>, transform_indices = @transform_5, window_bounds = array<i64: 3, 16, 16>}, {pipeline_mode = #tpu.pipeline_mode<synchronous>, transform_indices = @transform_6, window_bounds = array<i64: 3, 16, 1>}, {transform_indices = @transform_7, window_bounds = array<i64: 1, 16, 128>}]} {
    %0 = tpu.iota {dimensions = array<i32: 1>} : vector<16x128xi32>
    %c0 = arith.constant 0 : index
    %c0_0 = arith.constant 0 : index
    %c0_1 = arith.constant 0 : index
    %1 = vector.load %arg1[%c0, %c0_0, %c0_1] : memref<1x4x128xf32, #tpu.memory_space<vmem>>, vector<1x4x128xf32>
    %2 = vector.shape_cast %1 : vector<1x4x128xf32> to vector<4x128xf32>
    %3 = arith.truncf %2 : vector<4x128xf32> to vector<4x128xbf16>
    %c0_2 = arith.constant 0 : index
    %c0_3 = arith.constant 0 : index
    %4 = vector.load %arg2[%c0_2, %c0_3] : memref<16x4xbf16, #tpu.memory_space<vmem>>, vector<16x4xbf16>
    %cst = arith.constant dense<0.000000e+00> : vector<16x128xf32>
    %5 = tpu.matmul %4, %3, %cst {dimension_numbers = #tpu.dot_dimension_numbers<[1], [0], [0], [1], [0, 0, 1, 1], [], []>} : vector<16x4xbf16>, vector<4x128xbf16>, vector<16x128xf32> -> vector<16x128xf32>
    %c0_4 = arith.constant 0 : index
    %c0_5 = arith.constant 0 : index
    %6 = vector.load %arg3[%c0_4, %c0_5] : memref<16x1xf32, #tpu.memory_space<vmem>>, vector<16x1xf32>
    %7 = vector.broadcast %6 : vector<16x1xf32> to vector<16x128xf32>
    %8 = arith.addf %5, %7 : vector<16x128xf32>
    %9 = arith.truncf %8 : vector<16x128xf32> to vector<16x128xbf16>
    %c1_i32 = arith.constant 1 : i32
    %10 = tpu.dynamic_rotate %8 by %c1_i32 dim 1 : vector<16x128xf32>, i32 -> vector<16x128xf32>
    %c1_i32_6 = arith.constant 1 : i32
    %11 = vector.broadcast %c1_i32_6 : i32 to vector<16x128xi32>
    %12 = arith.cmpi sge, %0, %11 : vector<16x128xi32>
    %cst_7 = arith.constant 0.000000e+00 : f32
    %13 = vector.broadcast %cst_7 : f32 to vector<16x128xf32>
    %14 = arith.select %12, %10, %13 : vector<16x128xi1>, vector<16x128xf32>
    %15 = arith.truncf %14 : vector<16x128xf32> to vector<16x128xbf16>
    %c127_i32 = arith.constant 127 : i32
    %16 = tpu.dynamic_rotate %8 by %c127_i32 dim 1 : vector<16x128xf32>, i32 -> vector<16x128xf32>
    %c127_i32_8 = arith.constant 127 : i32
    %17 = vector.broadcast %c127_i32_8 : i32 to vector<16x128xi32>
    %18 = arith.cmpi slt, %0, %17 : vector<16x128xi32>
    %cst_9 = arith.constant 0.000000e+00 : f32
    %19 = vector.broadcast %cst_9 : f32 to vector<16x128xf32>
    %20 = arith.select %18, %16, %19 : vector<16x128xi1>, vector<16x128xf32>
    %21 = arith.truncf %20 : vector<16x128xf32> to vector<16x128xbf16>
    %22 = tpu.concatenate %15, %9, %21 in 0 : vector<16x128xbf16>, vector<16x128xbf16>, vector<16x128xbf16> -> vector<48x128xbf16>
    %c0_10 = arith.constant 0 : index
    %c0_11 = arith.constant 0 : index
    %c0_12 = arith.constant 0 : index
    %23 = vector.load %arg4[%c0_10, %c0_11, %c0_12] : memref<3x32x48xbf16, #tpu.memory_space<vmem>>, vector<1x32x48xbf16>
    %24 = vector.shape_cast %23 : vector<1x32x48xbf16> to vector<32x48xbf16>
    %cst_13 = arith.constant dense<0.000000e+00> : vector<32x128xf32>
    %25 = tpu.matmul %24, %22, %cst_13 {dimension_numbers = #tpu.dot_dimension_numbers<[1], [0], [0], [1], [0, 0, 1, 1], [], []>} : vector<32x48xbf16>, vector<48x128xbf16>, vector<32x128xf32> -> vector<32x128xf32>
    %c0_14 = arith.constant 0 : index
    %c0_15 = arith.constant 0 : index
    %c0_16 = arith.constant 0 : index
    %26 = vector.load %arg5[%c0_14, %c0_15, %c0_16] : memref<3x32x1xf32, #tpu.memory_space<vmem>>, vector<1x32x1xf32>
    %27 = vector.shape_cast %26 : vector<1x32x1xf32> to vector<32x1xf32>
    %28 = vector.broadcast %27 : vector<32x1xf32> to vector<32x128xf32>
    %29 = arith.addf %25, %28 : vector<32x128xf32>
    %30 = vector.extract_strided_slice %29 {offsets = [0, 0], sizes = [16, 128], strides = [1, 1]} : vector<32x128xf32> to vector<16x128xf32>
    %31 = math.tanh %30 : vector<16x128xf32>
    %32 = vector.extract_strided_slice %29 {offsets = [16, 0], sizes = [16, 128], strides = [1, 1]} : vector<32x128xf32> to vector<16x128xf32>
    %33 = arith.negf %32 : vector<16x128xf32>
    %34 = math.exp %33 : vector<16x128xf32>
    %cst_17 = arith.constant 1.000000e+00 : f32
    %35 = vector.broadcast %cst_17 : f32 to vector<16x128xf32>
    %36 = arith.addf %35, %34 : vector<16x128xf32>
    %37 = arith.divf %35, %36 : vector<16x128xf32>
    %38 = arith.mulf %31, %37 : vector<16x128xf32>
    %c0_18 = arith.constant 0 : index
    %c0_19 = arith.constant 0 : index
    %c0_20 = arith.constant 0 : index
    %39 = vector.load %arg6[%c0_18, %c0_19, %c0_20] : memref<3x16x16xbf16, #tpu.memory_space<vmem>>, vector<1x16x16xbf16>
    %40 = vector.shape_cast %39 : vector<1x16x16xbf16> to vector<16x16xbf16>
    %41 = arith.truncf %38 : vector<16x128xf32> to vector<16x128xbf16>
    %cst_21 = arith.constant dense<0.000000e+00> : vector<16x128xf32>
    %42 = tpu.matmul %40, %41, %cst_21 {dimension_numbers = #tpu.dot_dimension_numbers<[1], [0], [0], [1], [0, 0, 1, 1], [], []>} : vector<16x16xbf16>, vector<16x128xbf16>, vector<16x128xf32> -> vector<16x128xf32>
    %c0_22 = arith.constant 0 : index
    %c0_23 = arith.constant 0 : index
    %c0_24 = arith.constant 0 : index
    %43 = vector.load %arg7[%c0_22, %c0_23, %c0_24] : memref<3x16x1xf32, #tpu.memory_space<vmem>>, vector<1x16x1xf32>
    %44 = vector.shape_cast %43 : vector<1x16x1xf32> to vector<16x1xf32>
    %45 = vector.broadcast %44 : vector<16x1xf32> to vector<16x128xf32>
    %46 = arith.addf %42, %45 : vector<16x128xf32>
    %47 = arith.addf %8, %46 : vector<16x128xf32>
    %48 = arith.truncf %46 : vector<16x128xf32> to vector<16x128xbf16>
    %c2_i32 = arith.constant 2 : i32
    %49 = tpu.dynamic_rotate %46 by %c2_i32 dim 1 : vector<16x128xf32>, i32 -> vector<16x128xf32>
    %c2_i32_25 = arith.constant 2 : i32
    %50 = vector.broadcast %c2_i32_25 : i32 to vector<16x128xi32>
    %51 = arith.cmpi sge, %0, %50 : vector<16x128xi32>
    %cst_26 = arith.constant 0.000000e+00 : f32
    %52 = vector.broadcast %cst_26 : f32 to vector<16x128xf32>
    %53 = arith.select %51, %49, %52 : vector<16x128xi1>, vector<16x128xf32>
    %54 = arith.truncf %53 : vector<16x128xf32> to vector<16x128xbf16>
    %c126_i32 = arith.constant 126 : i32
    %55 = tpu.dynamic_rotate %46 by %c126_i32 dim 1 : vector<16x128xf32>, i32 -> vector<16x128xf32>
    %c126_i32_27 = arith.constant 126 : i32
    %56 = vector.broadcast %c126_i32_27 : i32 to vector<16x128xi32>
    %57 = arith.cmpi slt, %0, %56 : vector<16x128xi32>
    %cst_28 = arith.constant 0.000000e+00 : f32
    %58 = vector.broadcast %cst_28 : f32 to vector<16x128xf32>
    %59 = arith.select %57, %55, %58 : vector<16x128xi1>, vector<16x128xf32>
    %60 = arith.truncf %59 : vector<16x128xf32> to vector<16x128xbf16>
    %61 = tpu.concatenate %54, %48, %60 in 0 : vector<16x128xbf16>, vector<16x128xbf16>, vector<16x128xbf16> -> vector<48x128xbf16>
    %c1 = arith.constant 1 : index
    %c0_29 = arith.constant 0 : index
    %c0_30 = arith.constant 0 : index
    %62 = vector.load %arg4[%c1, %c0_29, %c0_30] : memref<3x32x48xbf16, #tpu.memory_space<vmem>>, vector<1x32x48xbf16>
    %63 = vector.shape_cast %62 : vector<1x32x48xbf16> to vector<32x48xbf16>
    %cst_31 = arith.constant dense<0.000000e+00> : vector<32x128xf32>
    %64 = tpu.matmul %63, %61, %cst_31 {dimension_numbers = #tpu.dot_dimension_numbers<[1], [0], [0], [1], [0, 0, 1, 1], [], []>} : vector<32x48xbf16>, vector<48x128xbf16>, vector<32x128xf32> -> vector<32x128xf32>
    %c1_32 = arith.constant 1 : index
    %c0_33 = arith.constant 0 : index
    %c0_34 = arith.constant 0 : index
    %65 = vector.load %arg5[%c1_32, %c0_33, %c0_34] : memref<3x32x1xf32, #tpu.memory_space<vmem>>, vector<1x32x1xf32>
    %66 = vector.shape_cast %65 : vector<1x32x1xf32> to vector<32x1xf32>
    %67 = vector.broadcast %66 : vector<32x1xf32> to vector<32x128xf32>
    %68 = arith.addf %64, %67 : vector<32x128xf32>
    %69 = vector.extract_strided_slice %68 {offsets = [0, 0], sizes = [16, 128], strides = [1, 1]} : vector<32x128xf32> to vector<16x128xf32>
    %70 = math.tanh %69 : vector<16x128xf32>
    %71 = vector.extract_strided_slice %68 {offsets = [16, 0], sizes = [16, 128], strides = [1, 1]} : vector<32x128xf32> to vector<16x128xf32>
    %72 = arith.negf %71 : vector<16x128xf32>
    %73 = math.exp %72 : vector<16x128xf32>
    %cst_35 = arith.constant 1.000000e+00 : f32
    %74 = vector.broadcast %cst_35 : f32 to vector<16x128xf32>
    %75 = arith.addf %74, %73 : vector<16x128xf32>
    %76 = arith.divf %74, %75 : vector<16x128xf32>
    %77 = arith.mulf %70, %76 : vector<16x128xf32>
    %c1_36 = arith.constant 1 : index
    %c0_37 = arith.constant 0 : index
    %c0_38 = arith.constant 0 : index
    %78 = vector.load %arg6[%c1_36, %c0_37, %c0_38] : memref<3x16x16xbf16, #tpu.memory_space<vmem>>, vector<1x16x16xbf16>
    %79 = vector.shape_cast %78 : vector<1x16x16xbf16> to vector<16x16xbf16>
    %80 = arith.truncf %77 : vector<16x128xf32> to vector<16x128xbf16>
    %cst_39 = arith.constant dense<0.000000e+00> : vector<16x128xf32>
    %81 = tpu.matmul %79, %80, %cst_39 {dimension_numbers = #tpu.dot_dimension_numbers<[1], [0], [0], [1], [0, 0, 1, 1], [], []>} : vector<16x16xbf16>, vector<16x128xbf16>, vector<16x128xf32> -> vector<16x128xf32>
    %c1_40 = arith.constant 1 : index
    %c0_41 = arith.constant 0 : index
    %c0_42 = arith.constant 0 : index
    %82 = vector.load %arg7[%c1_40, %c0_41, %c0_42] : memref<3x16x1xf32, #tpu.memory_space<vmem>>, vector<1x16x1xf32>
    %83 = vector.shape_cast %82 : vector<1x16x1xf32> to vector<16x1xf32>
    %84 = vector.broadcast %83 : vector<16x1xf32> to vector<16x128xf32>
    %85 = arith.addf %81, %84 : vector<16x128xf32>
    %86 = arith.addf %47, %85 : vector<16x128xf32>
    %87 = arith.truncf %85 : vector<16x128xf32> to vector<16x128xbf16>
    %c4_i32 = arith.constant 4 : i32
    %88 = tpu.dynamic_rotate %85 by %c4_i32 dim 1 : vector<16x128xf32>, i32 -> vector<16x128xf32>
    %c4_i32_43 = arith.constant 4 : i32
    %89 = vector.broadcast %c4_i32_43 : i32 to vector<16x128xi32>
    %90 = arith.cmpi sge, %0, %89 : vector<16x128xi32>
    %cst_44 = arith.constant 0.000000e+00 : f32
    %91 = vector.broadcast %cst_44 : f32 to vector<16x128xf32>
    %92 = arith.select %90, %88, %91 : vector<16x128xi1>, vector<16x128xf32>
    %93 = arith.truncf %92 : vector<16x128xf32> to vector<16x128xbf16>
    %c124_i32 = arith.constant 124 : i32
    %94 = tpu.dynamic_rotate %85 by %c124_i32 dim 1 : vector<16x128xf32>, i32 -> vector<16x128xf32>
    %c124_i32_45 = arith.constant 124 : i32
    %95 = vector.broadcast %c124_i32_45 : i32 to vector<16x128xi32>
    %96 = arith.cmpi slt, %0, %95 : vector<16x128xi32>
    %cst_46 = arith.constant 0.000000e+00 : f32
    %97 = vector.broadcast %cst_46 : f32 to vector<16x128xf32>
    %98 = arith.select %96, %94, %97 : vector<16x128xi1>, vector<16x128xf32>
    %99 = arith.truncf %98 : vector<16x128xf32> to vector<16x128xbf16>
    %100 = tpu.concatenate %93, %87, %99 in 0 : vector<16x128xbf16>, vector<16x128xbf16>, vector<16x128xbf16> -> vector<48x128xbf16>
    %c2 = arith.constant 2 : index
    %c0_47 = arith.constant 0 : index
    %c0_48 = arith.constant 0 : index
    %101 = vector.load %arg4[%c2, %c0_47, %c0_48] : memref<3x32x48xbf16, #tpu.memory_space<vmem>>, vector<1x32x48xbf16>
    %102 = vector.shape_cast %101 : vector<1x32x48xbf16> to vector<32x48xbf16>
    %cst_49 = arith.constant dense<0.000000e+00> : vector<32x128xf32>
    %103 = tpu.matmul %102, %100, %cst_49 {dimension_numbers = #tpu.dot_dimension_numbers<[1], [0], [0], [1], [0, 0, 1, 1], [], []>} : vector<32x48xbf16>, vector<48x128xbf16>, vector<32x128xf32> -> vector<32x128xf32>
    %c2_50 = arith.constant 2 : index
    %c0_51 = arith.constant 0 : index
    %c0_52 = arith.constant 0 : index
    %104 = vector.load %arg5[%c2_50, %c0_51, %c0_52] : memref<3x32x1xf32, #tpu.memory_space<vmem>>, vector<1x32x1xf32>
    %105 = vector.shape_cast %104 : vector<1x32x1xf32> to vector<32x1xf32>
    %106 = vector.broadcast %105 : vector<32x1xf32> to vector<32x128xf32>
    %107 = arith.addf %103, %106 : vector<32x128xf32>
    %108 = vector.extract_strided_slice %107 {offsets = [0, 0], sizes = [16, 128], strides = [1, 1]} : vector<32x128xf32> to vector<16x128xf32>
    %109 = math.tanh %108 : vector<16x128xf32>
    %110 = vector.extract_strided_slice %107 {offsets = [16, 0], sizes = [16, 128], strides = [1, 1]} : vector<32x128xf32> to vector<16x128xf32>
    %111 = arith.negf %110 : vector<16x128xf32>
    %112 = math.exp %111 : vector<16x128xf32>
    %cst_53 = arith.constant 1.000000e+00 : f32
    %113 = vector.broadcast %cst_53 : f32 to vector<16x128xf32>
    %114 = arith.addf %113, %112 : vector<16x128xf32>
    %115 = arith.divf %113, %114 : vector<16x128xf32>
    %116 = arith.mulf %109, %115 : vector<16x128xf32>
    %c2_54 = arith.constant 2 : index
    %c0_55 = arith.constant 0 : index
    %c0_56 = arith.constant 0 : index
    %117 = vector.load %arg6[%c2_54, %c0_55, %c0_56] : memref<3x16x16xbf16, #tpu.memory_space<vmem>>, vector<1x16x16xbf16>
    %118 = vector.shape_cast %117 : vector<1x16x16xbf16> to vector<16x16xbf16>
    %119 = arith.truncf %116 : vector<16x128xf32> to vector<16x128xbf16>
    %cst_57 = arith.constant dense<0.000000e+00> : vector<16x128xf32>
    %120 = tpu.matmul %118, %119, %cst_57 {dimension_numbers = #tpu.dot_dimension_numbers<[1], [0], [0], [1], [0, 0, 1, 1], [], []>} : vector<16x16xbf16>, vector<16x128xbf16>, vector<16x128xf32> -> vector<16x128xf32>
    %c2_58 = arith.constant 2 : index
    %c0_59 = arith.constant 0 : index
    %c0_60 = arith.constant 0 : index
    %121 = vector.load %arg7[%c2_58, %c0_59, %c0_60] : memref<3x16x1xf32, #tpu.memory_space<vmem>>, vector<1x16x1xf32>
    %122 = vector.shape_cast %121 : vector<1x16x1xf32> to vector<16x1xf32>
    %123 = vector.broadcast %122 : vector<16x1xf32> to vector<16x128xf32>
    %124 = arith.addf %120, %123 : vector<16x128xf32>
    %125 = arith.addf %86, %124 : vector<16x128xf32>
    %c0_61 = arith.constant 0 : index
    %c0_62 = arith.constant 0 : index
    %c0_63 = arith.constant 0 : index
    %126 = vector.load %arg8[%c0_61, %c0_62, %c0_63] : memref<1x16x128xf32, #tpu.memory_space<vmem>>, vector<1x16x128xf32>
    %127 = vector.shape_cast %126 : vector<1x16x128xf32> to vector<16x128xf32>
    %128 = vector.shape_cast %125 : vector<16x128xf32> to vector<1x16x128xf32>
    tpu.vector_store %arg8[%c0_61, %c0_62, %c0_63], %128 {strides = array<i32>} : memref<1x16x128xf32, #tpu.memory_space<vmem>>, vector<1x16x128xf32>,
    return
  }
  func.func @transform_0(%arg0: i32) -> (i32, i32, i32) {
    %c0_i32 = arith.constant 0 : i32
    %c0_i32_0 = arith.constant 0 : i32
    %c0_i32_1 = arith.constant 0 : i32
    return %arg0, %c0_i32, %c0_i32_0 : i32, i32, i32
  }
  func.func @transform_1(%arg0: i32) -> (i32, i32) {
    %c0_i32 = arith.constant 0 : i32
    %c0_i32_0 = arith.constant 0 : i32
    %c0_i32_1 = arith.constant 0 : i32
    return %c0_i32, %c0_i32_0 : i32, i32
  }
  func.func @transform_2(%arg0: i32) -> (i32, i32) {
    %c0_i32 = arith.constant 0 : i32
    %c0_i32_0 = arith.constant 0 : i32
    %c0_i32_1 = arith.constant 0 : i32
    return %c0_i32, %c0_i32_0 : i32, i32
  }
  func.func @transform_3(%arg0: i32) -> (i32, i32, i32) {
    %c0_i32 = arith.constant 0 : i32
    %c0_i32_0 = arith.constant 0 : i32
    %c0_i32_1 = arith.constant 0 : i32
    %c0_i32_2 = arith.constant 0 : i32
    return %c0_i32, %c0_i32_0, %c0_i32_1 : i32, i32, i32
  }
  func.func @transform_4(%arg0: i32) -> (i32, i32, i32) {
    %c0_i32 = arith.constant 0 : i32
    %c0_i32_0 = arith.constant 0 : i32
    %c0_i32_1 = arith.constant 0 : i32
    %c0_i32_2 = arith.constant 0 : i32
    return %c0_i32, %c0_i32_0, %c0_i32_1 : i32, i32, i32
  }
  func.func @transform_5(%arg0: i32) -> (i32, i32, i32) {
    %c0_i32 = arith.constant 0 : i32
    %c0_i32_0 = arith.constant 0 : i32
    %c0_i32_1 = arith.constant 0 : i32
    %c0_i32_2 = arith.constant 0 : i32
    return %c0_i32, %c0_i32_0, %c0_i32_1 : i32, i32, i32
  }
  func.func @transform_6(%arg0: i32) -> (i32, i32, i32) {
    %c0_i32 = arith.constant 0 : i32
    %c0_i32_0 = arith.constant 0 : i32
    %c0_i32_1 = arith.constant 0 : i32
    %c0_i32_2 = arith.constant 0 : i32
    return %c0_i32, %c0_i32_0, %c0_i32_1 : i32, i32, i32
  }
  func.func @transform_7(%arg0: i32) -> (i32, i32, i32) {
    %c0_i32 = arith.constant 0 : i32
    %c0_i32_0 = arith.constant 0 : i32
    %c0_i32_1 = arith.constant 0 : i32
    return %arg0, %c0_i32, %c0_i32_0 : i32, i32, i32
  }
}

</mosaic_0001>

<llo_original>
// kernel: tpu_custom_call.1
$region0: #{tpu_custom_call.1}
  #allocation0 [shape = 'u32[]', space=smem, size = 0x4, offset = 0x4, fixed_abs, tag = 'smem constant byte address 0x4 - core index']
  #allocation1 [shape = 'u32[72,128]{1,0:T(1,128)}', space=vmem, size = 0x9000, scoped, tag = 'internal scratch']
  %s0 = inlined_call_operand.vmem [shape: f32[2,4,128], index: 0, kind: input, shape index: {}]
  %s1 = inlined_call_operand.vmem [shape: bf16[16,4], index: 1, kind: input, shape index: {}]
  %s2 = inlined_call_operand.vmem [shape: f32[16,1], index: 2, kind: input, shape index: {}]
  %s3 = inlined_call_operand.vmem [shape: bf16[3,32,48], index: 3, kind: input, shape index: {}]
  %s4 = inlined_call_operand.vmem [shape: f32[3,32,1], index: 4, kind: input, shape index: {}]
  %s5 = inlined_call_operand.vmem [shape: bf16[3,16,16], index: 5, kind: input, shape index: {}]
  %s6 = inlined_call_operand.vmem [shape: f32[3,16,1], index: 6, kind: input, shape index: {}]
  %s7 = inlined_call_operand.hbm [shape: f32[2,16,128], index: 7, kind: output, shape index: {}]
  %s8 = sld [smem:[#allocation0]]
  $region61: #{tpu_custom_call.1} parent=0
    _
  %s10 = ssub.s32 1, %s8
  %s11 = scalar_select 0, %s10, %s8
  $region1: #{tpu_custom_call.1} parent=0
    #allocation2 [shape = 'u8[16384]{0}', space=vmem, size = 0x4000, scoped, tag = 'output window, operand 0']
    #allocation3 [shape = 's32[2]{0}', space=sflag, size = 0x8, scoped, tag = 'scoped memory for tpu_custom_call.1']
    %12 = vsyncpa [#allocation3], 0
    %s13 = scalar_lea.sflag [#allocation3], 1
    %14 = vsyncpa %s13, 0
    loop: start=0, step=1, limit=4
    $region2: #{tpu_custom_call.1} parent=1 // loop_pre_header
      _
    $region3: #{tpu_custom_call.1} parent=1 // loop_header
      %s16 = sphi 0, %s20
      %p17 = scmp.ge.s32.totalorder %s16, 4
      %s26 = sphi 0, %s28
      %s29 = sphi 0, %s26
      %s30 = sphi 0, %s29
      %s46 = sphi 0, %s30
      %s50 = sphi 0, %s50
      %s52 = sphi 0, %s50
      %s53 = sphi 0, %s52
      %s67 = sphi 0, %s53
      %s71 = sphi 0, %s71
      %s73 = sphi 0, %s71
      %s74 = sphi 0, %s73
      %s88 = sphi 0, %s74
      %s92 = sphi 0, %s92
      %s94 = sphi 0, %s92
      %s95 = sphi 0, %s94
      %s109 = sphi 0, %s95
      %s113 = sphi 0, %s113
      %s115 = sphi 0, %s113
      %s116 = sphi 0, %s115
      %s130 = sphi 0, %s116
      %s134 = sphi 0, %s134
      %s136 = sphi 0, %s134
      %s137 = sphi 0, %s136
      %s151 = sphi 0, %s137
      %s155 = sphi 0, %s155
      %s157 = sphi 0, %s155
      %s158 = sphi 0, %s157
      %s172 = sphi 0, %s158
      %s178 = sphi 0, %s180
      %s181 = sphi 0, %s178
      %s182 = sphi 0, %s181
      %s198 = sphi 0, %s182
    $region4: #{tpu_custom_call.1} parent=1 // loop_header_branch
      %19 = sbr.rel (%p17) target = $region8
    $region5: #{tpu_custom_call.1} parent=1 // loop_body
      %s21 = ssub.s32 %s16, 1
      %s22 = ssub.s32 %s16, 2
      %s23 = sadd.s32 %s16, 1
      %s24 = ssub.s32 %s16, %s23
      %p25 = scmp.eq.s32.totalorder %s24, 0
      %s27 = sadd.s32 %s26, 1
      %s28 = scalar_select %p25, %s26, %s27
      %p31 = pneg %p25
      %p32 = scmp.eq.s32.totalorder %s16, 1
      %p33 = por %p31, %p32
      %p34 = scmp.ne.s32.totalorder %s26, %s29
      %p35 = scmp.eq.s32.totalorder %s16, 0
      %p36 = por %p34, %p35
      %p37 = scmp.ne.s32.totalorder %s26, %s29
      %p38 = scmp.eq.s32.totalorder %s21, 1
      %p39 = por %p37, %p38
      %p40 = scmp.ne.s32.totalorder %s29, %s30
      %p41 = scmp.eq.s32.totalorder %s21, 0
      %p42 = por %p40, %p41
      %p43 = scmp.ne.s32.totalorder %s29, %s30
      %p44 = scmp.eq.s32.totalorder %s22, 1
      %p45 = por %p43, %p44
      %p47 = scmp.ne.s32.totalorder %s30, %s46
      %p48 = scmp.eq.s32.totalorder %s22, 0
      %p49 = por %p47, %p48
      %s51 = sadd.s32 %s50, 1
      %p54 = scmp.eq.s32.totalorder %s16, 1
      %p55 = scmp.ne.s32.totalorder %s50, %s52
      %p56 = scmp.eq.s32.totalorder %s16, 0
      %p57 = por %p55, %p56
      %p58 = scmp.ne.s32.totalorder %s50, %s52
      %p59 = scmp.eq.s32.totalorder %s21, 1
      %p60 = por %p58, %p59
      %p61 = scmp.ne.s32.totalorder %s52, %s53
      %p62 = scmp.eq.s32.totalorder %s21, 0
      %p63 = por %p61, %p62
      %p64 = scmp.ne.s32.totalorder %s52, %s53
      %p65 = scmp.eq.s32.totalorder %s22, 1
      %p66 = por %p64, %p65
      %p68 = scmp.ne.s32.totalorder %s53, %s67
      %p69 = scmp.eq.s32.totalorder %s22, 0
      %p70 = por %p68, %p69
      %s72 = sadd.s32 %s71, 1
      %p75 = scmp.eq.s32.totalorder %s16, 1
      %p76 = scmp.ne.s32.totalorder %s71, %s73
      %p77 = scmp.eq.s32.totalorder %s16, 0
      %p78 = por %p76, %p77
      %p79 = scmp.ne.s32.totalorder %s71, %s73
      %p80 = scmp.eq.s32.totalorder %s21, 1
      %p81 = por %p79, %p80
      %p82 = scmp.ne.s32.totalorder %s73, %s74
      %p83 = scmp.eq.s32.totalorder %s21, 0
      %p84 = por %p82, %p83
      %p85 = scmp.ne.s32.totalorder %s73, %s74
      %p86 = scmp.eq.s32.totalorder %s22, 1
      %p87 = por %p85, %p86
      %p89 = scmp.ne.s32.totalorder %s74, %s88
      %p90 = scmp.eq.s32.totalorder %s22, 0
      %p91 = por %p89, %p90
      %s93 = sadd.s32 %s92, 1
      %p96 = scmp.eq.s32.totalorder %s16, 1
      %p97 = scmp.ne.s32.totalorder %s92, %s94
      %p98 = scmp.eq.s32.totalorder %s16, 0
      %p99 = por %p97, %p98
      %p100 = scmp.ne.s32.totalorder %s92, %s94
      %p101 = scmp.eq.s32.totalorder %s21, 1
      %p102 = por %p100, %p101
      %p103 = scmp.ne.s32.totalorder %s94, %s95
      %p104 = scmp.eq.s32.totalorder %s21, 0
      %p105 = por %p103, %p104
      %p106 = scmp.ne.s32.totalorder %s94, %s95
      %p107 = scmp.eq.s32.totalorder %s22, 1
      %p108 = por %p106, %p107
      %p110 = scmp.ne.s32.totalorder %s95, %s109
      %p111 = scmp.eq.s32.totalorder %s22, 0
      %p112 = por %p110, %p111
      %s114 = sadd.s32 %s113, 1
      %p117 = scmp.eq.s32.totalorder %s16, 1
      %p118 = scmp.ne.s32.totalorder %s113, %s115
      %p119 = scmp.eq.s32.totalorder %s16, 0
      %p120 = por %p118, %p119
      %p121 = scmp.ne.s32.totalorder %s113, %s115
      %p122 = scmp.eq.s32.totalorder %s21, 1
      %p123 = por %p121, %p122
      %p124 = scmp.ne.s32.totalorder %s115, %s116
      %p125 = scmp.eq.s32.totalorder %s21, 0
      %p126 = por %p124, %p125
      %p127 = scmp.ne.s32.totalorder %s115, %s116
      %p128 = scmp.eq.s32.totalorder %s22, 1
      %p129 = por %p127, %p128
      %p131 = scmp.ne.s32.totalorder %s116, %s130
      %p132 = scmp.eq.s32.totalorder %s22, 0
      %p133 = por %p131, %p132
      %s135 = sadd.s32 %s134, 1
      %p138 = scmp.eq.s32.totalorder %s16, 1
      %p139 = scmp.ne.s32.totalorder %s134, %s136
      %p140 = scmp.eq.s32.totalorder %s16, 0
      %p141 = por %p139, %p140
      %p142 = scmp.ne.s32.totalorder %s134, %s136
      %p143 = scmp.eq.s32.totalorder %s21, 1
      %p144 = por %p142, %p143
      %p145 = scmp.ne.s32.totalorder %s136, %s137
      %p146 = scmp.eq.s32.totalorder %s21, 0
      %p147 = por %p145, %p146
      %p148 = scmp.ne.s32.totalorder %s136, %s137
      %p149 = scmp.eq.s32.totalorder %s22, 1
      %p150 = por %p148, %p149
      %p152 = scmp.ne.s32.totalorder %s137, %s151
      %p153 = scmp.eq.s32.totalorder %s22, 0
      %p154 = por %p152, %p153
      %s156 = sadd.s32 %s155, 1
      %p159 = scmp.eq.s32.totalorder %s16, 1
      %p160 = scmp.ne.s32.totalorder %s155, %s157
      %p161 = scmp.eq.s32.totalorder %s16, 0
      %p162 = por %p160, %p161
      %p163 = scmp.ne.s32.totalorder %s155, %s157
      %p164 = scmp.eq.s32.totalorder %s21, 1
      %p165 = por %p163, %p164
      %p166 = scmp.ne.s32.totalorder %s157, %s158
      %p167 = scmp.eq.s32.totalorder %s21, 0
      %p168 = por %p166, %p167
      %p169 = scmp.ne.s32.totalorder %s157, %s158
      %p170 = scmp.eq.s32.totalorder %s22, 1
      %p171 = por %p169, %p170
      %p173 = scmp.ne.s32.totalorder %s158, %s172
      %p174 = scmp.eq.s32.totalorder %s22, 0
      %p175 = por %p173, %p174
      %s176 = ssub.s32 %s16, %s23
      %p177 = scmp.eq.s32.totalorder %s176, 0
      %s179 = sadd.s32 %s178, 1
      %s180 = scalar_select %p177, %s178, %s179
      %p183 = pneg %p177
      %p184 = scmp.eq.s32.totalorder %s16, 1
      %p185 = por %p183, %p184
      %p186 = scmp.ne.s32.totalorder %s178, %s181
      %p187 = scmp.eq.s32.totalorder %s16, 0
      %p188 = por %p186, %p187
      %p189 = scmp.ne.s32.totalorder %s178, %s181
      %p190 = scmp.eq.s32.totalorder %s21, 1
      %p191 = por %p189, %p190
      %p192 = scmp.ne.s32.totalorder %s181, %s182
      %p193 = scmp.eq.s32.totalorder %s21, 0
      %p194 = por %p192, %p193
      %p195 = scmp.ne.s32.totalorder %s181, %s182
      %p196 = scmp.eq.s32.totalorder %s22, 1
      %p197 = por %p195, %p196
      %p199 = scmp.ne.s32.totalorder %s182, %s198
      %p200 = scmp.eq.s32.totalorder %s22, 0
      %p201 = por %p199, %p200
      %p202 = scmp.le.s32.totalorder 1, %s16
      %p203 = scmp.lt.s32.totalorder %s16, 3
      %p204 = pnand %p202, %p203
      %p205 = pneg %p204
      // Predicated region
      $region9: #{tpu_custom_call.1} parent=5 // pred_check
        _
      $region10: #{tpu_custom_call.1} parent=5 // pred_check_branch
        %207 = sbr.rel (%p204) target = $region12
      $region11: #{tpu_custom_call.1} parent=5 // pred_region
        %s208 = ssub.s32 %s16, 1
        // Predicated region
        $region13: #{tpu_custom_call.1} parent=11 // pred_check
          %p209 = pneg %p63
        $region14: #{tpu_custom_call.1} parent=11 // pred_check_branch
          %211 = sbr.rel (%p209) target = $region16
        $region15: #{tpu_custom_call.1} parent=11 // pred_region
          _
        $region16: #{tpu_custom_call.1} parent=11 // pred_fallthru
          _
        // Predicated region
        $region17: #{tpu_custom_call.1} parent=11 // pred_check
          %p212 = pneg %p84
        $region18: #{tpu_custom_call.1} parent=11 // pred_check_branch
          %214 = sbr.rel (%p212) target = $region20
        $region19: #{tpu_custom_call.1} parent=11 // pred_region
          _
        $region20: #{tpu_custom_call.1} parent=11 // pred_fallthru
          _
        // Predicated region
        $region21: #{tpu_custom_call.1} parent=11 // pred_check
          %p215 = pneg %p105
        $region22: #{tpu_custom_call.1} parent=11 // pred_check_branch
          %217 = sbr.rel (%p215) target = $region24
        $region23: #{tpu_custom_call.1} parent=11 // pred_region
          _
        $region24: #{tpu_custom_call.1} parent=11 // pred_fallthru
          _
        // Predicated region
        $region25: #{tpu_custom_call.1} parent=11 // pred_check
          %p218 = pneg %p126
        $region26: #{tpu_custom_call.1} parent=11 // pred_check_branch
          %220 = sbr.rel (%p218) target = $region28
        $region27: #{tpu_custom_call.1} parent=11 // pred_region
          _
        $region28: #{tpu_custom_call.1} parent=11 // pred_fallthru
          _
        // Predicated region
        $region29: #{tpu_custom_call.1} parent=11 // pred_check
          %p221 = pneg %p147
        $region30: #{tpu_custom_call.1} parent=11 // pred_check_branch
          %223 = sbr.rel (%p221) target = $region32
        $region31: #{tpu_custom_call.1} parent=11 // pred_region
          _
        $region32: #{tpu_custom_call.1} parent=11 // pred_fallthru
          _
        // Predicated region
        $region33: #{tpu_custom_call.1} parent=11 // pred_check
          %p224 = pneg %p168
        $region34: #{tpu_custom_call.1} parent=11 // pred_check_branch
          %226 = sbr.rel (%p224) target = $region36
        $region35: #{tpu_custom_call.1} parent=11 // pred_region
          _
        $region36: #{tpu_custom_call.1} parent=11 // pred_fallthru
          _
      $region12: #{tpu_custom_call.1} parent=5 // pred_fallthru
        _
      %p227 = scmp.lt.s32.totalorder %s16, 2
      // Predicated region
      $region37: #{tpu_custom_call.1} parent=5 // pred_check
        %p228 = pneg %p227
      $region38: #{tpu_custom_call.1} parent=5 // pred_check_branch
        %230 = sbr.rel (%p228) target = $region40
      $region39: #{tpu_custom_call.1} parent=5 // pred_region
        // Predicated region
        $region41: #{tpu_custom_call.1} parent=39 // pred_check
          %p231 = pneg %p36
        $region42: #{tpu_custom_call.1} parent=39 // pred_check_branch
          %233 = sbr.rel (%p231) target = $region44
        $region43: #{tpu_custom_call.1} parent=39 // pred_region
          %p234 = scmp.lt.s32.totalorder %s16, 1
          %s235 = scalar_select %p234, %s16, 1
          %s236 = smul.addr %s235, 4
          %s237 = scalar_lea.vmem %s0, %s236
        $region44: #{tpu_custom_call.1} parent=39 // pred_fallthru
          _
      $region40: #{tpu_custom_call.1} parent=5 // pred_fallthru
        _
      %p238 = scmp.le.s32.totalorder 1, %s16
      %p239 = scmp.lt.s32.totalorder %s16, 3
      %p240 = pnand %p238, %p239
      %p241 = pneg %p240
      // Predicated region
      $region45: #{tpu_custom_call.1} parent=5 // pred_check
        _
      $region46: #{tpu_custom_call.1} parent=5 // pred_check_branch
        %243 = sbr.rel (%p240) target = $region48
      $region47: #{tpu_custom_call.1} parent=5 // pred_region
        %s244 = ssub.s32 %s16, 1
        %p245 = scmp.lt.s32.totalorder %s21, 1
        %s246 = scalar_select %p245, %s21, 1
        %s247 = smul.addr %s246, 4
        %s248 = scalar_lea.vmem %s0, %s247
        %p249 = pneg %p42
        %p250 = pneg %p39
        %p251 = pneg %p63
        %p252 = pneg %p60
        %p253 = pneg %p84
        %p254 = pneg %p81
        %p255 = pneg %p105
        %p256 = pneg %p102
        %p257 = pneg %p126
        %p258 = pneg %p123
        %p259 = pneg %p147
        %p260 = pneg %p144
        %p261 = pneg %p168
        %p262 = pneg %p165
        %p263 = pneg %p194
        %p264 = pneg %p191
        %s265 = sand.u32 %s181, 1
        %s266 = scalar_lea.sflag [#allocation3], %s265
        %s267 = sand.u32 %s181, 1
        %s268 = smul.addr %s267, 16
        %s269 = scalar_lea.vmem [#allocation2], %s268
        %p270 = scmp.lt.s32.totalorder %s21, 1
        %s271 = scalar_select %p270, %s21, 1
        %s272 = smul.addr %s271, 4
        %s273 = scalar_lea.vmem %s0, %s272
        %v275 = vlaneseq
        %v276 = vand.u32 %v275, 127
        %v277 = vld [vmem:[%s273] sm:$0xf]
        %v278 = vpack.c.bf16 %v277, %v277
        %v279 = vld [vmem:[%s1] sm:$0xf]
        %v280 = vld [vmem:[%s1 + $0x4] sm:$0xf]
        %v281 = vld [vmem:[%s2] sm:$0xff]
        %v282 = vld [vmem:[%s2 + $0x8] sm:$0xff]
        %284 = vset.pattern.permute.xlu0 0
        %285 = vperm.xlu0 %284, %v281
        %v286 = vpop.permute.xlu0 %285
        %289 = vset.pattern.permute.xlu0 0
        %290 = vperm.xlu0 %289, %v282
        %v291 = vpop.permute.xlu0 %290
        %v295 = vunpack.c.l.b16 %v279
        %v296 = vunpack.c.l.b16 %v280
        %v297 = vpack.c.b16 %v296, %v295
        %vm298 = vcmask 31744
        %v300 = vsel %vm298, %v297, 0
        %vm302 = vcmask 1041408
        %v304 = vsel %vm302, %v278, 0
        %306 = vmatpush.bf16.msra.mxu0 0
        %307 = vmatpush.bf16.msra.mxu0 0
        %308 = vmatpush.bf16.msra.mxu0 0
        %309 = vmatpush.bf16.msra.mxu0 0
        %310 = vmatpush.bf16.msra.mxu0 0
        %311 = vmatpush.bf16.msra.mxu0 0
        %312 = vmatpush.bf16.msra.mxu0 0
        %313 = vmatpush.bf16.msra.mxu0 %v304
        %314 = vmatmul.bf16.gmra.mxu0 %v300
        %v315 = vpop.f32.mrf.mxu0
        %v316 = vadd.f32 %v286, %v315
        %v317 = vpop.f32.mrf.mxu0
        %v318 = vadd.f32 %v291, %v317
        %319 = vdwg.mxu0
        %v320 = vpack.c.bf16 %v316, %v316
        %v321 = vpack.c.bf16 %v318, %v318
        %322 = vrot.lane.b32.xlu0 %v316, 1
        %v323 = vpop.permute.xlu0 %322
        %324 = vrot.lane.b32.xlu0 %v318, 1
        %v325 = vpop.permute.xlu0 %324
        %vm326 = vcmp.ge.s32.totalorder %v276, 1
        %v327 = vsel %vm326, %v323, 0.0
        %v328 = vsel %vm326, %v325, 0.0
        %v329 = vpack.c.bf16 %v327, %v327
        %v330 = vpack.c.bf16 %v328, %v328
        %331 = vrot.lane.b32.xlu0 %v316, 127
        %v332 = vpop.permute.xlu0 %331
        %333 = vrot.lane.b32.xlu0 %v318, 127
        %v334 = vpop.permute.xlu0 %333
        %vm335 = vcmp.lt.s32.totalorder %v276, 127
        %v336 = vsel %vm335, %v332, 0.0
        %v337 = vsel %vm335, %v334, 0.0
        %v338 = vpack.c.bf16 %v336, %v336
        %v339 = vpack.c.bf16 %v337, %v337
        %v342 = vunpack.c.l.b16 %v329
        %v343 = vunpack.c.l.b16 %v330
        %v344 = vpack.c.b16 %v343, %v342
        %v348 = vunpack.c.l.b16 %v320
        %v349 = vunpack.c.l.b16 %v321
        %v350 = vpack.c.b16 %v349, %v348
        %v354 = vunpack.c.l.b16 %v338
        %v355 = vunpack.c.l.b16 %v339
        %v356 = vpack.c.b16 %v355, %v354
        %v358 = vld [vmem:[%s3] sm:$0xf]
        %v359 = vld [vmem:[%s3 + $0x4] sm:$0xf]
        %v360 = vld [vmem:[%s3 + $0x8] sm:$0xf]
        %v361 = vld [vmem:[%s3 + $0xc] sm:$0xf]
        %v362 = vld [vmem:[%s4] sm:$0xff]
        %v363 = vld [vmem:[%s4 + $0x8] sm:$0xff]
        %v364 = vld [vmem:[%s4 + $0x10] sm:$0xff]
        %v365 = vld [vmem:[%s4 + $0x18] sm:$0xff]
        %367 = vset.pattern.permute.xlu0 0
        %368 = vperm.xlu0 %367, %v362
        %v369 = vpop.permute.xlu0 %368
        %372 = vset.pattern.permute.xlu0 0
        %373 = vperm.xlu0 %372, %v363
        %v374 = vpop.permute.xlu0 %373
        %377 = vset.pattern.permute.xlu0 0
        %378 = vperm.xlu0 %377, %v364
        %v379 = vpop.permute.xlu0 %378
        %382 = vset.pattern.permute.xlu0 0
        %383 = vperm.xlu0 %382, %v365
        %v384 = vpop.permute.xlu0 %383
        %v390 = vunpack.c.l.b16 %v358
        %v391 = vunpack.c.l.b16 %v359
        %v392 = vunpack.c.l.b16 %v360
        %v393 = vunpack.c.l.b16 %v361
        %v394 = vpack.c.b16 %v391, %v390
        %v395 = vpack.c.b16 %v393, %v392
        %vm396 = vcmask 392192
        %v398 = vsel %vm396, %v394, 0
        %v401 = vsel %vm396, %v395, 0
        %403 = vmatpush.bf16.msra.mxu0 0
        %404 = vmatpush.bf16.msra.mxu0 0
        %405 = vmatpush.bf16.msra.mxu0 0
        %406 = vmatpush.bf16.msra.mxu0 0
        %407 = vmatpush.bf16.msra.mxu0 0
        %408 = vmatpush.bf16.msra.mxu0 %v356
        %409 = vmatpush.bf16.msra.mxu0 %v350
        %410 = vmatpush.bf16.msra.mxu0 %v344
        %411 = vmatmul.bf16.gmra.mxu0 %v398
        %v412 = vpop.f32.mrf.mxu0
        %v413 = vadd.f32 %v369, %v412
        %v414 = vpop.f32.mrf.mxu0
        %v415 = vadd.f32 %v374, %v414
        %416 = vmatmul.bf16.gmra.mxu0 %v401
        %v417 = vpop.f32.mrf.mxu0
        %v418 = vadd.f32 %v379, %v417
        %v419 = vpop.f32.mrf.mxu0
        %v420 = vadd.f32 %v384, %v419
        %421 = vdwg.mxu0
        %v422 = vtanh.pop %v413
        %v423 = vtanh.pop %v415
        %v424 = vxor.u32 %v418, 2147483648
        %v425 = vxor.u32 %v420, 2147483648
        %v426 = vmul.f32 %v424, 1.442695
        %v427 = vpow.pop %v426
        %v428 = vmul.f32 %v425, 1.442695
        %v429 = vpow.pop %v428
        %v430 = vadd.f32 %v427, 1.0
        %v431 = vadd.f32 %v429, 1.0
        %v432 = vrcp.pop %v430
        %v433 = vmul.f32 %v430, %v432
        %v434 = vsub.f32 1.0, %v433
        %v435 = vmul.f32 %v432, %v434
        %v436 = vadd.f32 %v432, %v435
        %vm437 = vweird.f32 %v430
        %vm438 = vweird.f32 %v432
        %vm439 = vmor %vm437, %vm438
        %v440 = vsel %vm439, %v432, %v436
        %v441 = vand.u32 2147483647, %v430
        %vm442 = vcmp.eq.f32.partialorder %v441, 8.507059e+37
        %v443 = vand.u32 %v430, 2147483648
        %v444 = vor.u32 1.1754944e-38, %v443
        %v445 = vsel %vm442, %v444, %v440
        %v446 = vmul.f32 1.0, %v445
        %v447 = vrcp.pop %v431
        %v448 = vmul.f32 %v431, %v447
        %v449 = vsub.f32 1.0, %v448
        %v450 = vmul.f32 %v447, %v449
        %v451 = vadd.f32 %v447, %v450
        %vm452 = vweird.f32 %v431
        %vm453 = vweird.f32 %v447
        %vm454 = vmor %vm452, %vm453
        %v455 = vsel %vm454, %v447, %v451
        %v456 = vand.u32 2147483647, %v431
        %vm457 = vcmp.eq.f32.partialorder %v456, 8.507059e+37
        %v458 = vand.u32 %v431, 2147483648
        %v459 = vor.u32 1.1754944e-38, %v458
        %v460 = vsel %vm457, %v459, %v455
        %v461 = vmul.f32 1.0, %v460
        %v462 = vmul.f32 %v422, %v446
        %v463 = vmul.f32 %v423, %v461
        %v464 = vld [vmem:[%s5] sm:$0xf]
        %v465 = vld [vmem:[%s5 + $0x4] sm:$0xf]
        %v466 = vpack.c.bf16 %v463, %v462
        %v467 = vld [vmem:[%s6] sm:$0xff]
        %v468 = vld [vmem:[%s6 + $0x8] sm:$0xff]
        %470 = vset.pattern.permute.xlu0 0
        %471 = vperm.xlu0 %470, %v467
        %v472 = vpop.permute.xlu0 %471
        %475 = vset.pattern.permute.xlu0 0
        %476 = vperm.xlu0 %475, %v468
        %v477 = vpop.permute.xlu0 %476
        %v481 = vunpack.c.l.b16 %v464
        %v482 = vunpack.c.l.b16 %v465
        %v483 = vpack.c.b16 %v482, %v481
        %vm484 = vcmask 130048
        %v486 = vsel %vm484, %v483, 0
        %488 = vmatpush.bf16.msra.mxu0 0
        %489 = vmatpush.bf16.msra.mxu0 0
        %490 = vmatpush.bf16.msra.mxu0 0
        %491 = vmatpush.bf16.msra.mxu0 0
        %492 = vmatpush.bf16.msra.mxu0 0
        %493 = vmatpush.bf16.msra.mxu0 0
        %494 = vmatpush.bf16.msra.mxu0 0
        %495 = vmatpush.bf16.msra.mxu0 %v466
        %496 = vmatmul.bf16.gmra.mxu0 %v486
        %v497 = vpop.f32.mrf.mxu0
        %v498 = vadd.f32 %v472, %v497
        %v499 = vpop.f32.mrf.mxu0
        %v500 = vadd.f32 %v477, %v499
        %501 = vdwg.mxu0
        %v502 = vadd.f32 %v316, %v498
        %v503 = vadd.f32 %v318, %v500
        %v504 = vpack.c.bf16 %v498, %v498
        %v505 = vpack.c.bf16 %v500, %v500
        %506 = vrot.lane.b32.xlu0 %v498, 2
        %v507 = vpop.permute.xlu0 %506
        %508 = vrot.lane.b32.xlu0 %v500, 2
        %v509 = vpop.permute.xlu0 %508
        %vm510 = vcmp.ge.s32.totalorder %v276, 2
        %v511 = vsel %vm510, %v507, 0.0
        %v512 = vsel %vm510, %v509, 0.0
        %v513 = vpack.c.bf16 %v511, %v511
        %v514 = vpack.c.bf16 %v512, %v512
        %515 = vrot.lane.b32.xlu0 %v498, 126
        %v516 = vpop.permute.xlu0 %515
        %517 = vrot.lane.b32.xlu0 %v500, 126
        %v518 = vpop.permute.xlu0 %517
        %vm519 = vcmp.lt.s32.totalorder %v276, 126
        %v520 = vsel %vm519, %v516, 0.0
        %v521 = vsel %vm519, %v518, 0.0
        %v522 = vpack.c.bf16 %v520, %v520
        %v523 = vpack.c.bf16 %v521, %v521
        %v526 = vunpack.c.l.b16 %v513
        %v527 = vunpack.c.l.b16 %v514
        %v528 = vpack.c.b16 %v527, %v526
        %v532 = vunpack.c.l.b16 %v504
        %v533 = vunpack.c.l.b16 %v505
        %v534 = vpack.c.b16 %v533, %v532
        %v538 = vunpack.c.l.b16 %v522
        %v539 = vunpack.c.l.b16 %v523
        %v540 = vpack.c.b16 %v539, %v538
        %s542 = scalar_lea.vmem %s3, 16
        %v543 = vld [vmem:[%s542] sm:$0xf]
        %v544 = vld [vmem:[%s542 + $0x4] sm:$0xf]
        %v545 = vld [vmem:[%s542 + $0x8] sm:$0xf]
        %v546 = vld [vmem:[%s542 + $0xc] sm:$0xf]
        %s547 = scalar_lea.vmem %s4, 32
        %v548 = vld [vmem:[%s547] sm:$0xff]
        %v549 = vld [vmem:[%s547 + $0x8] sm:$0xff]
        %v550 = vld [vmem:[%s547 + $0x10] sm:$0xff]
        %v551 = vld [vmem:[%s547 + $0x18] sm:$0xff]
        %553 = vset.pattern.permute.xlu0 0
        %554 = vperm.xlu0 %553, %v548
        %v555 = vpop.permute.xlu0 %554
        %558 = vset.pattern.permute.xlu0 0
        %559 = vperm.xlu0 %558, %v549
        %v560 = vpop.permute.xlu0 %559
        %563 = vset.pattern.permute.xlu0 0
        %564 = vperm.xlu0 %563, %v550
        %v565 = vpop.permute.xlu0 %564
        %568 = vset.pattern.permute.xlu0 0
        %569 = vperm.xlu0 %568, %v551
        %v570 = vpop.permute.xlu0 %569
        %v576 = vunpack.c.l.b16 %v543
        %v577 = vunpack.c.l.b16 %v544
        %v578 = vunpack.c.l.b16 %v545
        %v579 = vunpack.c.l.b16 %v546
        %v580 = vpack.c.b16 %v577, %v576
        %v581 = vpack.c.b16 %v579, %v578
        %v583 = vsel %vm396, %v580, 0
        %v586 = vsel %vm396, %v581, 0
        %588 = vmatpush.bf16.msra.mxu0 0
        %589 = vmatpush.bf16.msra.mxu0 0
        %590 = vmatpush.bf16.msra.mxu0 0
        %591 = vmatpush.bf16.msra.mxu0 0
        %592 = vmatpush.bf16.msra.mxu0 0
        %593 = vmatpush.bf16.msra.mxu0 %v540
        %594 = vmatpush.bf16.msra.mxu0 %v534
        %595 = vmatpush.bf16.msra.mxu0 %v528
        %596 = vmatmul.bf16.gmra.mxu0 %v583
        %v597 = vpop.f32.mrf.mxu0
        %v598 = vadd.f32 %v555, %v597
        %v599 = vpop.f32.mrf.mxu0
        %v600 = vadd.f32 %v560, %v599
        %601 = vmatmul.bf16.gmra.mxu0 %v586
        %v602 = vpop.f32.mrf.mxu0
        %v603 = vadd.f32 %v565, %v602
        %v604 = vpop.f32.mrf.mxu0
        %v605 = vadd.f32 %v570, %v604
        %606 = vdwg.mxu0
        %v607 = vtanh.pop %v598
        %v608 = vtanh.pop %v600
        %v609 = vxor.u32 %v603, 2147483648
        %v610 = vxor.u32 %v605, 2147483648
        %v611 = vmul.f32 %v609, 1.442695
        %v612 = vpow.pop %v611
        %v613 = vmul.f32 %v610, 1.442695
        %v614 = vpow.pop %v613
        %v615 = vadd.f32 %v612, 1.0
        %v616 = vadd.f32 %v614, 1.0
        %v617 = vrcp.pop %v615
        %v618 = vmul.f32 %v615, %v617
        %v619 = vsub.f32 1.0, %v618
        %v620 = vmul.f32 %v617, %v619
        %v621 = vadd.f32 %v617, %v620
        %vm622 = vweird.f32 %v615
        %vm623 = vweird.f32 %v617
        %vm624 = vmor %vm622, %vm623
        %v625 = vsel %vm624, %v617, %v621
        %v626 = vand.u32 2147483647, %v615
        %vm627 = vcmp.eq.f32.partialorder %v626, 8.507059e+37
        %v628 = vand.u32 %v615, 2147483648
        %v629 = vor.u32 1.1754944e-38, %v628
        %v630 = vsel %vm627, %v629, %v625
        %v631 = vmul.f32 1.0, %v630
        %v632 = vrcp.pop %v616
        %v633 = vmul.f32 %v616, %v632
        %v634 = vsub.f32 1.0, %v633
        %v635 = vmul.f32 %v632, %v634
        %v636 = vadd.f32 %v632, %v635
        %vm637 = vweird.f32 %v616
        %vm638 = vweird.f32 %v632
        %vm639 = vmor %vm637, %vm638
        %v640 = vsel %vm639, %v632, %v636
        %v641 = vand.u32 2147483647, %v616
        %vm642 = vcmp.eq.f32.partialorder %v641, 8.507059e+37
        %v643 = vand.u32 %v616, 2147483648
        %v644 = vor.u32 1.1754944e-38, %v643
        %v645 = vsel %vm642, %v644, %v640
        %v646 = vmul.f32 1.0, %v645
        %v647 = vmul.f32 %v607, %v631
        %v648 = vmul.f32 %v608, %v646
        %s649 = scalar_lea.vmem %s5, 8
        %v650 = vld [vmem:[%s649] sm:$0xf]
        %v651 = vld [vmem:[%s649 + $0x4] sm:$0xf]
        %v652 = vpack.c.bf16 %v648, %v647
        %s653 = scalar_lea.vmem %s6, 16
        %v654 = vld [vmem:[%s653] sm:$0xff]
        %v655 = vld [vmem:[%s653 + $0x8] sm:$0xff]
        %657 = vset.pattern.permute.xlu0 0
        %658 = vperm.xlu0 %657, %v654
        %v659 = vpop.permute.xlu0 %658
        %662 = vset.pattern.permute.xlu0 0
        %663 = vperm.xlu0 %662, %v655
        %v664 = vpop.permute.xlu0 %663
        %v668 = vunpack.c.l.b16 %v650
        %v669 = vunpack.c.l.b16 %v651
        %v670 = vpack.c.b16 %v669, %v668
        %v672 = vsel %vm484, %v670, 0
        %674 = vmatpush.bf16.msra.mxu0 0
        %675 = vmatpush.bf16.msra.mxu0 0
        %676 = vmatpush.bf16.msra.mxu0 0
        %677 = vmatpush.bf16.msra.mxu0 0
        %678 = vmatpush.bf16.msra.mxu0 0
        %679 = vmatpush.bf16.msra.mxu0 0
        %680 = vmatpush.bf16.msra.mxu0 0
        %681 = vmatpush.bf16.msra.mxu0 %v652
        %682 = vmatmul.bf16.gmra.mxu0 %v672
        %v683 = vpop.f32.mrf.mxu0
        %v684 = vadd.f32 %v659, %v683
        %v685 = vpop.f32.mrf.mxu0
        %v686 = vadd.f32 %v664, %v685
        %687 = vdwg.mxu0
        %v688 = vadd.f32 %v502, %v684
        %v689 = vadd.f32 %v503, %v686
        %v690 = vpack.c.bf16 %v684, %v684
        %v691 = vpack.c.bf16 %v686, %v686
        %692 = vrot.lane.b32.xlu0 %v684, 4
        %v693 = vpop.permute.xlu0 %692
        %694 = vrot.lane.b32.xlu0 %v686, 4
        %v695 = vpop.permute.xlu0 %694
        %vm696 = vcmp.ge.s32.totalorder %v276, 4
        %v697 = vsel %vm696, %v693, 0.0
        %v698 = vsel %vm696, %v695, 0.0
        %v699 = vpack.c.bf16 %v697, %v697
        %v700 = vpack.c.bf16 %v698, %v698
        %701 = vrot.lane.b32.xlu0 %v684, 124
        %v702 = vpop.permute.xlu0 %701
        %703 = vrot.lane.b32.xlu0 %v686, 124
        %v704 = vpop.permute.xlu0 %703
        %vm705 = vcmp.lt.s32.totalorder %v276, 124
        %v706 = vsel %vm705, %v702, 0.0
        %v707 = vsel %vm705, %v704, 0.0
        %v708 = vpack.c.bf16 %v706, %v706
        %v709 = vpack.c.bf16 %v707, %v707
        %v712 = vunpack.c.l.b16 %v699
        %v713 = vunpack.c.l.b16 %v700
        %v714 = vpack.c.b16 %v713, %v712
        %v718 = vunpack.c.l.b16 %v690
        %v719 = vunpack.c.l.b16 %v691
        %v720 = vpack.c.b16 %v719, %v718
        %v724 = vunpack.c.l.b16 %v708
        %v725 = vunpack.c.l.b16 %v709
        %v726 = vpack.c.b16 %v725, %v724
        %s728 = scalar_lea.vmem %s3, 32
        %v729 = vld [vmem:[%s728] sm:$0xf]
        %v730 = vld [vmem:[%s728 + $0x4] sm:$0xf]
        %v731 = vld [vmem:[%s728 + $0x8] sm:$0xf]
        %v732 = vld [vmem:[%s728 + $0xc] sm:$0xf]
        %s733 = scalar_lea.vmem %s4, 64
        %v734 = vld [vmem:[%s733] sm:$0xff]
        %v735 = vld [vmem:[%s733 + $0x8] sm:$0xff]
        %v736 = vld [vmem:[%s733 + $0x10] sm:$0xff]
        %v737 = vld [vmem:[%s733 + $0x18] sm:$0xff]
        %739 = vset.pattern.permute.xlu0 0
        %740 = vperm.xlu0 %739, %v734
        %v741 = vpop.permute.xlu0 %740
        %744 = vset.pattern.permute.xlu0 0
        %745 = vperm.xlu0 %744, %v735
        %v746 = vpop.permute.xlu0 %745
        %749 = vset.pattern.permute.xlu0 0
        %750 = vperm.xlu0 %749, %v736
        %v751 = vpop.permute.xlu0 %750
        %754 = vset.pattern.permute.xlu0 0
        %755 = vperm.xlu0 %754, %v737
        %v756 = vpop.permute.xlu0 %755
        %v762 = vunpack.c.l.b16 %v729
        %v763 = vunpack.c.l.b16 %v730
        %v764 = vunpack.c.l.b16 %v731
        %v765 = vunpack.c.l.b16 %v732
        %v766 = vpack.c.b16 %v763, %v762
        %v767 = vpack.c.b16 %v765, %v764
        %v769 = vsel %vm396, %v766, 0
        %v772 = vsel %vm396, %v767, 0
        %774 = vmatpush.bf16.msra.mxu0 0
        %775 = vmatpush.bf16.msra.mxu0 0
        %776 = vmatpush.bf16.msra.mxu0 0
        %777 = vmatpush.bf16.msra.mxu0 0
        %778 = vmatpush.bf16.msra.mxu0 0
        %779 = vmatpush.bf16.msra.mxu0 %v726
        %780 = vmatpush.bf16.msra.mxu0 %v720
        %781 = vmatpush.bf16.msra.mxu0 %v714
        %782 = vmatmul.bf16.gmra.mxu0 %v769
        %v783 = vpop.f32.mrf.mxu0
        %v784 = vadd.f32 %v741, %v783
        %v785 = vpop.f32.mrf.mxu0
        %v786 = vadd.f32 %v746, %v785
        %787 = vmatmul.bf16.gmra.mxu0 %v772
        %v788 = vpop.f32.mrf.mxu0
        %v789 = vadd.f32 %v751, %v788
        %v790 = vpop.f32.mrf.mxu0
        %v791 = vadd.f32 %v756, %v790
        %792 = vdwg.mxu0
        %v793 = vtanh.pop %v784
        %v794 = vtanh.pop %v786
        %v795 = vxor.u32 %v789, 2147483648
        %v796 = vxor.u32 %v791, 2147483648
        %v797 = vmul.f32 %v795, 1.442695
        %v798 = vpow.pop %v797
        %v799 = vmul.f32 %v796, 1.442695
        %v800 = vpow.pop %v799
        %v801 = vadd.f32 %v798, 1.0
        %v802 = vadd.f32 %v800, 1.0
        %v803 = vrcp.pop %v801
        %v804 = vmul.f32 %v801, %v803
        %v805 = vsub.f32 1.0, %v804
        %v806 = vmul.f32 %v803, %v805
        %v807 = vadd.f32 %v803, %v806
        %vm808 = vweird.f32 %v801
        %vm809 = vweird.f32 %v803
        %vm810 = vmor %vm808, %vm809
        %v811 = vsel %vm810, %v803, %v807
        %v812 = vand.u32 2147483647, %v801
        %vm813 = vcmp.eq.f32.partialorder %v812, 8.507059e+37
        %v814 = vand.u32 %v801, 2147483648
        %v815 = vor.u32 1.1754944e-38, %v814
        %v816 = vsel %vm813, %v815, %v811
        %v817 = vmul.f32 1.0, %v816
        %v818 = vrcp.pop %v802
        %v819 = vmul.f32 %v802, %v818
        %v820 = vsub.f32 1.0, %v819
        %v821 = vmul.f32 %v818, %v820
        %v822 = vadd.f32 %v818, %v821
        %vm823 = vweird.f32 %v802
        %vm824 = vweird.f32 %v818
        %vm825 = vmor %vm823, %vm824
        %v826 = vsel %vm825, %v818, %v822
        %v827 = vand.u32 2147483647, %v802
        %vm828 = vcmp.eq.f32.partialorder %v827, 8.507059e+37
        %v829 = vand.u32 %v802, 2147483648
        %v830 = vor.u32 1.1754944e-38, %v829
        %v831 = vsel %vm828, %v830, %v826
        %v832 = vmul.f32 1.0, %v831
        %v833 = vmul.f32 %v793, %v817
        %v834 = vmul.f32 %v794, %v832
        %s835 = scalar_lea.vmem %s5, 16
        %v836 = vld [vmem:[%s835] sm:$0xf]
        %v837 = vld [vmem:[%s835 + $0x4] sm:$0xf]
        %v838 = vpack.c.bf16 %v834, %v833
        %s839 = scalar_lea.vmem %s6, 32
        %v840 = vld [vmem:[%s839] sm:$0xff]
        %v841 = vld [vmem:[%s839 + $0x8] sm:$0xff]
        %843 = vset.pattern.permute.xlu0 0
        %844 = vperm.xlu0 %843, %v840
        %v845 = vpop.permute.xlu0 %844
        %848 = vset.pattern.permute.xlu0 0
        %849 = vperm.xlu0 %848, %v841
        %v850 = vpop.permute.xlu0 %849
        %v854 = vunpack.c.l.b16 %v836
        %v855 = vunpack.c.l.b16 %v837
        %v856 = vpack.c.b16 %v855, %v854
        %v858 = vsel %vm484, %v856, 0
        %860 = vmatpush.bf16.msra.mxu0 0
        %861 = vmatpush.bf16.msra.mxu0 0
        %862 = vmatpush.bf16.msra.mxu0 0
        %863 = vmatpush.bf16.msra.mxu0 0
        %864 = vmatpush.bf16.msra.mxu0 0
        %865 = vmatpush.bf16.msra.mxu0 0
        %866 = vmatpush.bf16.msra.mxu0 0
        %867 = vmatpush.bf16.msra.mxu0 %v838
        %868 = vmatmul.bf16.gmra.mxu0 %v858
        %v869 = vpop.f32.mrf.mxu0
        %v870 = vadd.f32 %v845, %v869
        %v871 = vpop.f32.mrf.mxu0
        %v872 = vadd.f32 %v850, %v871
        %873 = vdwg.mxu0
        %v874 = vadd.f32 %v688, %v870
        %v875 = vadd.f32 %v689, %v872
        %876 = vst [vmem:[%s269] sm:$0xff] %v874
        %877 = vst [vmem:[%s269 + $0x8] sm:$0xff] %v875
        %s878 = sand.u32 %s181, 1
        %s879 = scalar_lea.sflag [#allocation3], %s878
        %s880 = sand.u32 %s181, 1
        %s881 = smul.addr %s880, 16
        %s882 = scalar_lea.vmem [#allocation2], %s881
        // Predicated region
        $region49: #{tpu_custom_call.1} parent=47 // pred_check
          %p883 = pneg %p191
        $region50: #{tpu_custom_call.1} parent=47 // pred_check_branch
          %885 = sbr.rel (%p883) target = $region52
        $region51: #{tpu_custom_call.1} parent=47 // pred_region
          %887 = vsyncadd %s879, 0
          %s888 = smul.addr %s21, 2
          %s889 = smul.addr %s888, 8
          %s890 = scalar_lea.hbm %s7, %s889
          %s891 = sshll.u32 %s882, 4
          %s892 = int_to_ptr.vmem [resolvable:$true] %s891
          %s893 = sshll.u32 %s890, 4
          %s894 = int_to_ptr.hbm [resolvable:$true] %s893
          %899 = dma.vmem_to_hbm [thread:$0]  %s892, 256, %s894, %s879, 128, 128, 8
        $region52: #{tpu_custom_call.1} parent=47 // pred_fallthru
          _
      $region48: #{tpu_custom_call.1} parent=5 // pred_fallthru
        _
      %p900 = scmp.le.s32.totalorder 2, %s16
      // Predicated region
      $region53: #{tpu_custom_call.1} parent=5 // pred_check
        %p901 = pneg %p900
      $region54: #{tpu_custom_call.1} parent=5 // pred_check_branch
        %903 = sbr.rel (%p901) target = $region56
      $region55: #{tpu_custom_call.1} parent=5 // pred_region
        %s904 = ssub.s32 %s16, 2
        // Predicated region
        $region57: #{tpu_custom_call.1} parent=55 // pred_check
          %p905 = pneg %p197
        $region58: #{tpu_custom_call.1} parent=55 // pred_check_branch
          %907 = sbr.rel (%p905) target = $region60
        $region59: #{tpu_custom_call.1} parent=55 // pred_region
          %s908 = sand.u32 %s182, 1
          %s909 = scalar_lea.sflag [#allocation3], %s908
          %s910 = sand.u32 %s182, 1
          %s911 = smul.addr %s910, 16
          %s912 = scalar_lea.vmem [#allocation2], %s911
          %914 = dma.done %s909, 256
        $region60: #{tpu_custom_call.1} parent=55 // pred_fallthru
          _
      $region56: #{tpu_custom_call.1} parent=5 // pred_fallthru
        _
    $region6: #{tpu_custom_call.1} parent=1 // loop_footer
      %s20 = sadd.s32 1, %s16
    $region7: #{tpu_custom_call.1} parent=1 // loop_footer_branch
      %15 = sbr.rel target = $region3
    $region8: #{tpu_custom_call.1} parent=1 // loop_exit
      _
    %915 = vsyncpa [#allocation3], 1
    %s916 = scalar_lea.sflag [#allocation3], 1
    %917 = vsyncpa %s916, 1

</llo_original>
